<compile_context>
chip_gen: v5e
topology: v5e:2x2
jax: 0.10.0
libtpu: 0.0.40
codegen_flags: <defaults>
</compile_context>

<pallas_src>
import functools
import math
from typing import NamedTuple, Optional

import jax
import jax.numpy as jnp
from jax.experimental import pallas as pl
from jax.experimental.pallas import tpu as pltpu


def _round_up(x, m):
    return ((x + m - 1) // m) * m


def _pick_tile(dim, desired, *, keep_two_blocks=False):
    """Pick a tile size (multiple of 128) that divides round_up(dim, 128).

    Choosing a divisor of the 128-aligned dim means the persistent operand is
    padded only to lane alignment -- no extra padding is streamed from HBM.
    """
    padded = _round_up(max(int(dim), 1), 128)
    nblk = padded // 128
    max_blk = max(1, int(desired) // 128)
    if keep_two_blocks and nblk >= 2:
        # keep >= 2 blocks so the "parallel" grid axis can shard across the
        # two TensorCores on v7x (harmless on single-TC v5e/v6e)
        max_blk = min(max_blk, max(1, nblk // 2))
    best = 1
    for d in range(1, min(max_blk, nblk) + 1):
        if nblk % d == 0:
            best = d
    return best * 128, padded


# -----------------------------------------------------------------------------
# Kernel
# -----------------------------------------------------------------------------
def _linear_kernel(*refs, use_bias, multi_k, use_acc):
    """Compute one (tm, tn) output tile of x @ W_t + b.

    Refs (positional): x (tm, tk), w_t (tk, tn), [bias (1, tn)], out (tm, tn),
    [acc scratch (tm, tn) f32].
    """
    if use_bias:
        x_ref, w_ref, b_ref, o_ref = refs[0], refs[1], refs[2], refs[3]
        scratch = refs[4:]
    else:
        x_ref, w_ref, o_ref = refs[0], refs[1], refs[2]
        b_ref = None
        scratch = refs[3:]

    def _dot():
        # canonical (tm,tk) x (tk,tn) MXU matmul, f32 accumulation
        return jnp.dot(x_ref[...], w_ref[...],
                       preferred_element_type=jnp.float32)

    if not multi_k:
        # Single-K fast path: no accumulator round-trip, no epilogue pass.
        r = _dot()
        if use_bias:
            r = r + b_ref[...]
        o_ref[...] = r.astype(o_ref.dtype)
        return

    # Multi-K reduction. If the output is f32, accumulate directly into the
    # VMEM-resident output block; otherwise use the f32 scratch accumulator.
    acc_ref = scratch[0] if use_acc else o_ref
    k = pl.program_id(2)

    @pl.when(k == 0)
    def _init():
        if use_bias:
            acc_ref[...] = jnp.broadcast_to(
                b_ref[...], acc_ref.shape).astype(acc_ref.dtype)
        else:
            acc_ref[...] = jnp.zeros_like(acc_ref)

    acc_ref[...] += _dot()

    if use_acc:
        @pl.when(k == pl.num_programs(2) - 1)
        def _finalize():
            o_ref[...] = acc_ref[...].astype(o_ref.dtype)


# -----------------------------------------------------------------------------
# Parameter preprocessing (one-time, outside the per-call hot path)
# -----------------------------------------------------------------------------
class LinearParams(NamedTuple):
    w_t: jax.Array               # (Kp, Np) pre-transposed, pre-padded weight
    b_row: Optional[jax.Array]   # (1, Np) f32 bias row, or None
    n_out: int                   # true output_size (N)
    n_in: int                    # true input_size (K)
    tn: int
    tk: int


def prepare_linear_params(weight, bias=None, *, tn=1024, tk=1024,
                          compute_dtype=None):
    """One-time preprocessing of the reused Linear parameters.

    weight: (N, K) in native PyTorch (output_size, input_size) layout.
    bias:   (N, 1) or None.
    compute_dtype: e.g. jnp.bfloat16 to halve weight HBM traffic
                   (f32 accumulation is always kept).
    """
    weight = jnp.asarray(weight)
    N, K = weight.shape
    tk_, Kp = _pick_tile(K, tk)
    tn_, Np = _pick_tile(N, tn, keep_two_blocks=True)

    w_t = weight.T  # (K, N): canonical MXU orientation, lane dim = N
    if compute_dtype is not None:
        w_t = w_t.astype(compute_dtype)
    if (Kp, Np) != (K, N):
        w_t = jnp.pad(w_t, ((0, Kp - K), (0, Np - N)))

    b_row = None
    if bias is not None:
        b_row = jnp.asarray(bias).reshape(1, N).astype(jnp.float32)
        if Np != N:
            b_row = jnp.pad(b_row, ((0, 0), (0, Np - N)))
    return LinearParams(w_t, b_row, int(N), int(K), int(tn_), int(tk_))


# -----------------------------------------------------------------------------
# Forward
# -----------------------------------------------------------------------------
@functools.partial(jax.jit, static_argnames=("n_out", "tn", "tk", "tm"))
def _linear_call(x, w_t, b_row, *, n_out, tn, tk, tm):
    M, K = x.shape
    Kp, Np = w_t.shape
    out_dtype = x.dtype
    compute_dtype = w_t.dtype

    # Sublane-aligned M tile: 8 rows for 32-bit, 16 for bf16, 32 for 8-bit.
    sub = max(8, 32 // jnp.dtype(compute_dtype).itemsize)
    tm_ = min(tm, _round_up(M, sub))
    Mp = _round_up(M, tm_)

    xc = x.astype(compute_dtype) if x.dtype != compute_dtype else x
    if (Mp, Kp) != (M, K):
        # zero-padding K keeps the reduction exact; padded rows are sliced off
        xc = jnp.pad(xc, ((0, Mp - M), (0, Kp - K)))

    use_bias = b_row is not None
    multi_k = Kp != tk
    use_acc = multi_k and out_dtype != jnp.float32

    if multi_k:
        grid = (Mp // tm_, Np // tn, Kp // tk)
        x_spec = pl.BlockSpec((tm_, tk), lambda i, j, k: (i, k))
        w_spec = pl.BlockSpec((tk, tn), lambda i, j, k: (k, j))
        b_spec = pl.BlockSpec((1, tn), lambda i, j, k: (0, j))
        o_spec = pl.BlockSpec((tm_, tn), lambda i, j, k: (i, j))
        dims = ("parallel", "parallel", "arbitrary")
    else:
        grid = (Mp // tm_, Np // tn)
        x_spec = pl.BlockSpec((tm_, tk), lambda i, j: (i, 0))
        w_spec = pl.BlockSpec((tk, tn), lambda i, j: (0, j))
        b_spec = pl.BlockSpec((1, tn), lambda i, j: (0, j))
        o_spec = pl.BlockSpec((tm_, tn), lambda i, j: (i, j))
        dims = ("parallel", "parallel")

    scratch = [pltpu.VMEM((tm_, tn), jnp.float32)] if use_acc else []

    in_bytes = jnp.dtype(compute_dtype).itemsize
    out_bytes = jnp.dtype(out_dtype).itemsize
    # Double-buffered x / w / bias / out blocks + optional f32 accumulator.
    vmem_bytes = 2 * (tm_ * tk * in_bytes + tk * tn * in_bytes
                      + tm_ * tn * out_bytes + (tn * 4 if use_bias else 0))
    if use_acc:
        vmem_bytes += tm_ * tn * 4
    try:
        vmem_cap = int(pltpu.get_tpu_info().vmem_capacity_bytes)
    except Exception:
        vmem_cap = 64 * 1024 * 1024  # conservative: v7x per-TC VMEM
    vmem_limit = min(max(32 << 20, (vmem_bytes * 3) // 2),
                     (vmem_cap * 3) // 4)

    # Advisory cost: count operand re-reads (x read Np/tn times, weight read
    # Mp/tm times) so XLA overlaps the surrounding graph properly.
    cost = pl.CostEstimate(
        flops=2 * Mp * Np * Kp,
        transcendentals=0,
        bytes_accessed=(Mp * Kp * in_bytes) * (Np // tn)
        + (Kp * Np * in_bytes) * (Mp // tm_)
        + Mp * Np * out_bytes,
    )

    kernel = functools.partial(_linear_kernel, use_bias=use_bias,
                               multi_k=multi_k, use_acc=use_acc)
    in_specs = [x_spec, w_spec] + ([b_spec] if use_bias else [])
    operands = (xc, w_t) + ((b_row,) if use_bias else ())

    out = pl.pallas_call(
        kernel,
        out_shape=jax.ShapeDtypeStruct((Mp, Np), out_dtype),
        grid_spec=pltpu.PrefetchScalarGridSpec(
            num_scalar_prefetch=0,
            grid=grid,
            in_specs=in_specs,
            out_specs=o_spec,
            scratch_shapes=scratch,
        ),
        compiler_params=pltpu.CompilerParams(
            dimension_semantics=dims,
            vmem_limit_bytes=vmem_limit,
        ),
        cost_estimate=cost,
    )(*operands)

    if (Mp, Np) != (M, n_out):
        out = out[:M, :n_out]
    return out


def linear_forward(x, params: LinearParams, *, tm=512):
    """Pallas equivalent of F.linear(x, weight, bias.view(-1)).

    x: (M, K) activations; params: output of prepare_linear_params.
    Returns (M, N) with x's dtype.
    """
    w_t, b_row, n_out, n_in, tn, tk = params
    assert x.shape[-1] == n_in, "input feature dim mismatch"
    return _linear_call(x, w_t, b_row, n_out=n_out, tn=tn, tk=tk, tm=tm)


def init_linear_params(key, input_size, output_size, use_bias=True):
    """Deterministic init mirroring the module's reset_parameters().

    kaiming_uniform_(a=sqrt(5)) on a (out, in) weight ->
        U(-1/sqrt(fan_in), 1/sqrt(fan_in)); bias uses the same bound.
    """
    kw, kb = jax.random.split(key)
    bound = 1.0 / math.sqrt(input_size)
    weight = jax.random.uniform(
        kw, (output_size, input_size), jnp.float32, minval=-bound, maxval=bound
    )
    bias = None
    if use_bias:
        bias = jax.random.uniform(
            kb, (output_size, 1), jnp.float32, minval=-bound, maxval=bound
        )
    return weight, bias


if __name__ == "__main__":
    key = jax.random.PRNGKey(0)
    k_x, k_p = jax.random.split(key)

    batch = 16
    input_size = 300    # not a multiple of 128 (padding / single-K path)
    output_size = 670   # not a multiple of 128 (divisor tile selection path)

    x = jax.random.normal(k_x, (batch, input_size), dtype=jnp.float32)
    weight, bias = init_linear_params(k_p, input_size, output_size, use_bias=True)

    # Pure-JAX reference.
    y_ref = x @ weight.T + bias.reshape(-1)[None, :]

    # f32 path with defaults: single-K fast path, no accumulator scratch.
    params = prepare_linear_params(weight, bias)
    y = jax.block_until_ready(linear_forward(x, params))
    assert y.shape == (batch, output_size)
    assert jnp.allclose(y, y_ref, atol=1e-4, rtol=1e-4), "mismatch (default)"

    # Small tiles: multi-K reduction, f32 output accumulated directly in o_ref.
    params_small = prepare_linear_params(weight, bias, tn=128, tk=128)
    y_small = jax.block_until_ready(linear_forward(x, params_small, tm=8))
    assert jnp.allclose(y_small, y_ref, atol=1e-4, rtol=1e-4), "mismatch (multi-K)"

    # bias=None path.
    params_nb = prepare_linear_params(weight, None)
    y_nb = jax.block_until_ready(linear_forward(x, params_nb))
    assert jnp.allclose(y_nb, x @ weight.T, atol=1e-4, rtol=1e-4), "mismatch (no bias)"

    # bf16 weight streaming (f32 accumulation), single-K path.
    params_bf16 = prepare_linear_params(weight, bias, compute_dtype=jnp.bfloat16)
    y_bf16 = jax.block_until_ready(linear_forward(x, params_bf16))
    assert jnp.allclose(y_bf16, y_ref, atol=5e-2, rtol=5e-2), "mismatch (bf16)"

    # bf16 activations + multi-K: exercises the scratch-accumulator path.
    params_bf16_small = prepare_linear_params(
        weight, bias, tn=128, tk=128, compute_dtype=jnp.bfloat16)
    y_acc = jax.block_until_ready(
        linear_forward(x.astype(jnp.bfloat16), params_bf16_small, tm=16))
    assert jnp.allclose(y_acc.astype(jnp.float32), y_ref, atol=1e-1, rtol=1e-1), \
        "mismatch (bf16 multi-K acc)"

    print("KERNEL_OK")
</pallas_src>

<mosaic_0001>
module attributes {stable_mosaic.version = 11 : i64} {
  func.func @_linear_kernel(%arg0: i32, %arg1: i32, %arg2: memref<16x384xf32, #tpu.memory_space<vmem>>, %arg3: memref<384x384xf32, #tpu.memory_space<vmem>>, %arg4: memref<1x384xf32, #tpu.memory_space<vmem>>, %arg5: memref<16x384xf32, #tpu.memory_space<vmem>>) attributes {dimension_semantics = [#tpu.dimension_semantics<parallel>, #tpu.dimension_semantics<parallel>], iteration_bounds = array<i64: 1, 2>, scalar_prefetch = 0 : i64, scratch_operands = 0 : i64, tpu.core_type = #tpu.core_type<tc>, window_params = [{transform_indices = @transform_0, window_bounds = array<i64: 16, 384>}, {transform_indices = @transform_1, window_bounds = array<i64: 384, 384>}, {transform_indices = @transform_2, window_bounds = array<i64: 1, 384>}, {transform_indices = @transform_3, window_bounds = array<i64: 16, 384>}]} {
    %c0 = arith.constant 0 : index
    %c0_0 = arith.constant 0 : index
    %0 = vector.load %arg2[%c0, %c0_0] : memref<16x384xf32, #tpu.memory_space<vmem>>, vector<16x384xf32>
    %c0_1 = arith.constant 0 : index
    %c0_2 = arith.constant 0 : index
    %1 = vector.load %arg3[%c0_1, %c0_2] : memref<384x384xf32, #tpu.memory_space<vmem>>, vector<384x384xf32>
    %cst = arith.constant dense<0.000000e+00> : vector<16x384xf32>
    %2 = tpu.matmul %0, %1, %cst {dimension_numbers = #tpu.dot_dimension_numbers<[1], [0], [0], [1], [0, 0, 1, 1], [], []>} : vector<16x384xf32>, vector<384x384xf32>, vector<16x384xf32> -> vector<16x384xf32>
    %c0_3 = arith.constant 0 : index
    %c0_4 = arith.constant 0 : index
    %3 = vector.load %arg4[%c0_3, %c0_4] : memref<1x384xf32, #tpu.memory_space<vmem>>, vector<1x384xf32>
    %4 = vector.broadcast %3 : vector<1x384xf32> to vector<16x384xf32>
    %5 = arith.addf %2, %4 : vector<16x384xf32>
    %c0_5 = arith.constant 0 : index
    %c0_6 = arith.constant 0 : index
    %6 = vector.load %arg5[%c0_5, %c0_6] : memref<16x384xf32, #tpu.memory_space<vmem>>, vector<16x384xf32>
    tpu.vector_store %arg5[%c0_5, %c0_6], %5 {strides = array<i32>} : memref<16x384xf32, #tpu.memory_space<vmem>>, vector<16x384xf32>,
    return
  }
  func.func @transform_0(%arg0: i32, %arg1: i32) -> (i32, i32) {
    %c0_i32 = arith.constant 0 : i32
    %c0_i32_0 = arith.constant 0 : i32
    return %arg0, %c0_i32 : i32, i32
  }
  func.func @transform_1(%arg0: i32, %arg1: i32) -> (i32, i32) {
    %c0_i32 = arith.constant 0 : i32
    %c0_i32_0 = arith.constant 0 : i32
    return %c0_i32, %arg1 : i32, i32
  }
  func.func @transform_2(%arg0: i32, %arg1: i32) -> (i32, i32) {
    %c0_i32 = arith.constant 0 : i32
    %c0_i32_0 = arith.constant 0 : i32
    return %c0_i32, %arg1 : i32, i32
  }
  func.func @transform_3(%arg0: i32, %arg1: i32) -> (i32, i32) {
    %c0_i32 = arith.constant 0 : i32
    return %arg0, %arg1 : i32, i32
  }
}

</mosaic_0001>

<llo_original>
// kernel: _linear_call.1
$region0: #{_linear_call.1}
  #allocation0 [shape = 'u32[]', space=smem, size = 0x4, offset = 0x4, fixed_abs, tag = 'smem constant byte address 0x4 - core index']
  #allocation1 [shape = 'u32[72,128]{1,0:T(1,128)}', space=vmem, size = 0x9000, scoped, tag = 'internal scratch']
  %s0 = inlined_call_operand.vmem [shape: f32[16,384], index: 0, kind: input, shape index: {}]
  %s1 = inlined_call_operand.hbm [shape: f32[384,768], index: 1, kind: input, shape index: {}]
  %s2 = inlined_call_operand.hbm [shape: f32[1,768], index: 2, kind: input, shape index: {}]
  %s3 = inlined_call_operand.hbm [shape: f32[16,768], index: 3, kind: output, shape index: {}]
  %s4 = sld [smem:[#allocation0]]
  $region53: #{_linear_call.1} parent=0
    _
  %s6 = ssub.s32 1, %s4
  %s7 = scalar_select 0, %s6, %s4
  $region1: #{_linear_call.1} parent=0
    #allocation2 [shape = 'u8[1179648]{0}', space=vmem, size = 0x120000, scoped, tag = 'input window, operand 1']
    #allocation3 [shape = 's32[2]{0}', space=sflag, size = 0x8, scoped, tag = 'scoped memory for _linear_call.1']
    #allocation4 [shape = 's32[2]{0}', space=sflag, size = 0x8, scoped, tag = 'scoped memory for _linear_call.1']
    #allocation5 [shape = 'u8[3072]{0}', space=vmem, size = 0xc00, scoped, tag = 'input window, operand 2']
    #allocation6 [shape = 's32[2]{0}', space=sflag, size = 0x8, scoped, tag = 'scoped memory for _linear_call.1']
    #allocation7 [shape = 'u8[49152]{0}', space=vmem, size = 0xc000, scoped, tag = 'output window, operand 0']
    %8 = vsyncpa [#allocation3], 0
    %s9 = scalar_lea.sflag [#allocation3], 1
    %10 = vsyncpa %s9, 0
    %11 = vsyncpa [#allocation6], 0
    %s12 = scalar_lea.sflag [#allocation6], 1
    %13 = vsyncpa %s12, 0
    %14 = vsyncpa [#allocation4], 0
    %s15 = scalar_lea.sflag [#allocation4], 1
    %16 = vsyncpa %s15, 0
    loop: start=0, step=1, limit=4
    $region2: #{_linear_call.1} parent=1 // loop_pre_header
      _
    $region3: #{_linear_call.1} parent=1 // loop_header
      %s18 = sphi 0, %s22
      %p19 = scmp.ge.s32.totalorder %s18, 4
      %s25 = sphi 0, %s37
      %s26 = sphi 0, %s33
      %s27 = sphi 0, %s25
      %s28 = sphi 0, %s26
      %s29 = sphi 0, %s27
      %s30 = sphi 0, %s28
      %s40 = sphi 0, %s42
      %s43 = sphi 0, %s40
      %s44 = sphi 0, %s43
      %s60 = sphi 0, %s44
      %s66 = sphi 0, %s68
      %s69 = sphi 0, %s66
      %s70 = sphi 0, %s69
      %s86 = sphi 0, %s70
      %s92 = sphi 0, %s94
      %s95 = sphi 0, %s92
      %s96 = sphi 0, %s95
      %s112 = sphi 0, %s96
      %s120 = sphi 0, %s122
      %s123 = sphi 0, %s120
      %s124 = sphi 0, %s123
      %s140 = sphi 0, %s124
    $region4: #{_linear_call.1} parent=1 // loop_header_branch
      %21 = sbr.rel (%p19) target = $region8
    $region5: #{_linear_call.1} parent=1 // loop_body
      %s23 = ssub.s32 %s18, 1
      %s24 = ssub.s32 %s18, 2
      %s31 = sadd.s32 1, %s26
      %p32 = scmp.ge.s32.totalorder %s31, 2
      %s33 = scalar_select %p32, 0, %s31
      %s34 = sadd.s32 1, %s25
      %s35 = scalar_select %p32, %s34, %s25
      %p36 = scmp.ge.s32.totalorder %s35, 1
      %s37 = scalar_select %p36, 0, %s35
      %s38 = ssub.s32 %s25, %s37
      %p39 = scmp.eq.s32.totalorder %s38, 0
      %s41 = sadd.s32 %s40, 1
      %s42 = scalar_select %p39, %s40, %s41
      %p45 = pneg %p39
      %p46 = scmp.eq.s32.totalorder %s18, 1
      %p47 = por %p45, %p46
      %p48 = scmp.ne.s32.totalorder %s40, %s43
      %p49 = scmp.eq.s32.totalorder %s18, 0
      %p50 = por %p48, %p49
      %p51 = scmp.ne.s32.totalorder %s40, %s43
      %p52 = scmp.eq.s32.totalorder %s23, 1
      %p53 = por %p51, %p52
      %p54 = scmp.ne.s32.totalorder %s43, %s44
      %p55 = scmp.eq.s32.totalorder %s23, 0
      %p56 = por %p54, %p55
      %p57 = scmp.ne.s32.totalorder %s43, %s44
      %p58 = scmp.eq.s32.totalorder %s24, 1
      %p59 = por %p57, %p58
      %p61 = scmp.ne.s32.totalorder %s44, %s60
      %p62 = scmp.eq.s32.totalorder %s24, 0
      %p63 = por %p61, %p62
      %s64 = ssub.s32 %s26, %s33
      %p65 = scmp.eq.s32.totalorder %s64, 0
      %s67 = sadd.s32 %s66, 1
      %s68 = scalar_select %p65, %s66, %s67
      %p71 = pneg %p65
      %p72 = scmp.eq.s32.totalorder %s18, 1
      %p73 = por %p71, %p72
      %p74 = scmp.ne.s32.totalorder %s66, %s69
      %p75 = scmp.eq.s32.totalorder %s18, 0
      %p76 = por %p74, %p75
      %p77 = scmp.ne.s32.totalorder %s66, %s69
      %p78 = scmp.eq.s32.totalorder %s23, 1
      %p79 = por %p77, %p78
      %p80 = scmp.ne.s32.totalorder %s69, %s70
      %p81 = scmp.eq.s32.totalorder %s23, 0
      %p82 = por %p80, %p81
      %p83 = scmp.ne.s32.totalorder %s69, %s70
      %p84 = scmp.eq.s32.totalorder %s24, 1
      %p85 = por %p83, %p84
      %p87 = scmp.ne.s32.totalorder %s70, %s86
      %p88 = scmp.eq.s32.totalorder %s24, 0
      %p89 = por %p87, %p88
      %s90 = ssub.s32 %s26, %s33
      %p91 = scmp.eq.s32.totalorder %s90, 0
      %s93 = sadd.s32 %s92, 1
      %s94 = scalar_select %p91, %s92, %s93
      %p97 = pneg %p91
      %p98 = scmp.eq.s32.totalorder %s18, 1
      %p99 = por %p97, %p98
      %p100 = scmp.ne.s32.totalorder %s92, %s95
      %p101 = scmp.eq.s32.totalorder %s18, 0
      %p102 = por %p100, %p101
      %p103 = scmp.ne.s32.totalorder %s92, %s95
      %p104 = scmp.eq.s32.totalorder %s23, 1
      %p105 = por %p103, %p104
      %p106 = scmp.ne.s32.totalorder %s95, %s96
      %p107 = scmp.eq.s32.totalorder %s23, 0
      %p108 = por %p106, %p107
      %p109 = scmp.ne.s32.totalorder %s95, %s96
      %p110 = scmp.eq.s32.totalorder %s24, 1
      %p111 = por %p109, %p110
      %p113 = scmp.ne.s32.totalorder %s96, %s112
      %p114 = scmp.eq.s32.totalorder %s24, 0
      %p115 = por %p113, %p114
      %s116 = ssub.s32 %s25, %s37
      %s117 = ssub.s32 %s26, %s33
      %s118 = sor.u32 %s116, %s117
      %p119 = scmp.eq.s32.totalorder %s118, 0
      %s121 = sadd.s32 %s120, 1
      %s122 = scalar_select %p119, %s120, %s121
      %p125 = pneg %p119
      %p126 = scmp.eq.s32.totalorder %s18, 1
      %p127 = por %p125, %p126
      %p128 = scmp.ne.s32.totalorder %s120, %s123
      %p129 = scmp.eq.s32.totalorder %s18, 0
      %p130 = por %p128, %p129
      %p131 = scmp.ne.s32.totalorder %s120, %s123
      %p132 = scmp.eq.s32.totalorder %s23, 1
      %p133 = por %p131, %p132
      %p134 = scmp.ne.s32.totalorder %s123, %s124
      %p135 = scmp.eq.s32.totalorder %s23, 0
      %p136 = por %p134, %p135
      %p137 = scmp.ne.s32.totalorder %s123, %s124
      %p138 = scmp.eq.s32.totalorder %s24, 1
      %p139 = por %p137, %p138
      %p141 = scmp.ne.s32.totalorder %s124, %s140
      %p142 = scmp.eq.s32.totalorder %s24, 0
      %p143 = por %p141, %p142
      %p144 = scmp.le.s32.totalorder 1, %s18
      %p145 = scmp.lt.s32.totalorder %s18, 3
      %p146 = pnand %p144, %p145
      %p147 = pneg %p146
      // Predicated region
      $region9: #{_linear_call.1} parent=5 // pred_check
        _
      $region10: #{_linear_call.1} parent=5 // pred_check_branch
        %149 = sbr.rel (%p146) target = $region12
      $region11: #{_linear_call.1} parent=5 // pred_region
        %s150 = ssub.s32 %s18, 1
        // Predicated region
        $region13: #{_linear_call.1} parent=11 // pred_check
          %p151 = pneg %p56
        $region14: #{_linear_call.1} parent=11 // pred_check_branch
          %153 = sbr.rel (%p151) target = $region16
        $region15: #{_linear_call.1} parent=11 // pred_region
          %s154 = smul.u32 2, %s27
          %p155 = scmp.lt.s32.totalorder %s154, 1
          %s156 = scalar_select %p155, %s154, 1
          %s157 = smul.addr %s156, 3
          %s158 = smul.addr %s157, 8
          %s159 = scalar_lea.vmem %s0, %s158
          %s160 = smul.u32 2, %s27
        $region16: #{_linear_call.1} parent=11 // pred_fallthru
          _
      $region12: #{_linear_call.1} parent=5 // pred_fallthru
        _
      %p161 = scmp.lt.s32.totalorder %s18, 2
      // Predicated region
      $region17: #{_linear_call.1} parent=5 // pred_check
        %p162 = pneg %p161
      $region18: #{_linear_call.1} parent=5 // pred_check_branch
        %164 = sbr.rel (%p162) target = $region20
      $region19: #{_linear_call.1} parent=5 // pred_region
        // Predicated region
        $region21: #{_linear_call.1} parent=19 // pred_check
          %p165 = pneg %p76
        $region22: #{_linear_call.1} parent=19 // pred_check_branch
          %167 = sbr.rel (%p165) target = $region24
        $region23: #{_linear_call.1} parent=19 // pred_region
          %s168 = sand.u32 %s66, 1
          %s169 = scalar_lea.sflag [#allocation3], %s168
          %s170 = sand.u32 %s66, 1
          %s171 = smul.addr %s170, 1152
          %s172 = scalar_lea.vmem [#allocation2], %s171
          %s173 = smul.u32 3, %s26
          %175 = vsyncadd %s169, 0
          %s176 = smul.addr %s173, 8
          %s177 = scalar_lea.hbm %s1, %s176
          %s178 = sshll.u32 %s177, 4
          %s179 = int_to_ptr.hbm [resolvable:$true] %s178
          %s180 = sshll.u32 %s172, 4
          %s181 = int_to_ptr.vmem [resolvable:$true] %s180
          %186 = dma.hbm_to_vmem [thread:$0]  %s179, 18432, %s181, %s169, 768, 384, 24
        $region24: #{_linear_call.1} parent=19 // pred_fallthru
          _
        // Predicated region
        $region25: #{_linear_call.1} parent=19 // pred_check
          %p187 = pneg %p102
        $region26: #{_linear_call.1} parent=19 // pred_check_branch
          %189 = sbr.rel (%p187) target = $region28
        $region27: #{_linear_call.1} parent=19 // pred_region
          %s190 = sand.u32 %s92, 1
          %s191 = scalar_lea.sflag [#allocation6], %s190
          %s192 = sand.u32 %s92, 1
          %s193 = smul.addr %s192, 3
          %s194 = scalar_lea.vmem [#allocation5], %s193
          %s195 = smul.u32 3, %s26
          %197 = vsyncadd %s191, 0
          %s198 = scalar_lea.hbm %s2, %s195
          %s200 = sshll.u32 %s198, 4
          %s201 = int_to_ptr.hbm [resolvable:$true] %s200
          %s202 = sshll.u32 %s194, 4
          %s203 = int_to_ptr.vmem [resolvable:$true] %s202
          %205 = dma.hbm_to_vmem [thread:$0]  %s201, 48, %s203, %s191
        $region28: #{_linear_call.1} parent=19 // pred_fallthru
          _
      $region20: #{_linear_call.1} parent=5 // pred_fallthru
        _
      %p206 = scmp.le.s32.totalorder 1, %s18
      %p207 = scmp.lt.s32.totalorder %s18, 3
      %p208 = pnand %p206, %p207
      %p209 = pneg %p208
      // Predicated region
      $region29: #{_linear_call.1} parent=5 // pred_check
        _
      $region30: #{_linear_call.1} parent=5 // pred_check_branch
        %211 = sbr.rel (%p208) target = $region32
      $region31: #{_linear_call.1} parent=5 // pred_region
        %s212 = ssub.s32 %s18, 1
        %s213 = sand.u32 %s69, 1
        %s214 = scalar_lea.sflag [#allocation3], %s213
        %s215 = sand.u32 %s69, 1
        %s216 = smul.addr %s215, 1152
        %s217 = scalar_lea.vmem [#allocation2], %s216
        // Predicated region
        $region33: #{_linear_call.1} parent=31 // pred_check
          %p218 = pneg %p82
        $region34: #{_linear_call.1} parent=31 // pred_check_branch
          %220 = sbr.rel (%p218) target = $region36
        $region35: #{_linear_call.1} parent=31 // pred_region
          %222 = dma.done %s214, 18432
        $region36: #{_linear_call.1} parent=31 // pred_fallthru
          _
        %s223 = sand.u32 %s95, 1
        %s224 = scalar_lea.sflag [#allocation6], %s223
        %s225 = sand.u32 %s95, 1
        %s226 = smul.addr %s225, 3
        %s227 = scalar_lea.vmem [#allocation5], %s226
        // Predicated region
        $region37: #{_linear_call.1} parent=31 // pred_check
          %p228 = pneg %p108
        $region38: #{_linear_call.1} parent=31 // pred_check_branch
          %230 = sbr.rel (%p228) target = $region40
        $region39: #{_linear_call.1} parent=31 // pred_region
          %232 = dma.done %s224, 48
        $region40: #{_linear_call.1} parent=31 // pred_fallthru
          _
        %s233 = smul.u32 2, %s27
        %p234 = scmp.lt.s32.totalorder %s233, 1
        %s235 = scalar_select %p234, %s233, 1
        %s236 = smul.addr %s235, 3
        %s237 = smul.addr %s236, 8
        %s238 = scalar_lea.vmem %s0, %s237
        %p239 = pneg %p56
        %p240 = pneg %p53
        %s241 = sand.u32 %s69, 1
        %s242 = scalar_lea.sflag [#allocation3], %s241
        %s243 = sand.u32 %s69, 1
        %s244 = smul.addr %s243, 1152
        %s245 = scalar_lea.vmem [#allocation2], %s244
        %p246 = pneg %p82
        %p247 = pneg %p79
        %s248 = sand.u32 %s95, 1
        %s249 = scalar_lea.sflag [#allocation6], %s248
        %s250 = sand.u32 %s95, 1
        %s251 = smul.addr %s250, 3
        %s252 = scalar_lea.vmem [#allocation5], %s251
        %p253 = pneg %p108
        %p254 = pneg %p105
        %p255 = pneg %p136
        %p256 = pneg %p133
        %s257 = sand.u32 %s123, 1
        %s258 = scalar_lea.sflag [#allocation4], %s257
        %s259 = sand.u32 %s123, 1
        %s260 = smul.addr %s259, 48
        %s261 = scalar_lea.vmem [#allocation7], %s260
        %s262 = smul.u32 2, %s27
        %p263 = scmp.lt.s32.totalorder %s262, 1
        %s264 = scalar_select %p263, %s262, 1
        %s265 = smul.addr %s264, 3
        %s266 = smul.addr %s265, 8
        %s267 = scalar_lea.vmem %s0, %s266
        %s268 = smul.u32 2, %s27
        %s269 = smul.u32 3, %s28
        %s270 = smul.u32 3, %s28
        %s271 = smul.u32 2, %s27
        %s272 = smul.u32 3, %s28
        %v273 = vld [vmem:[%s267] sm:$0xff]
        %v274 = vld [vmem:[%s267 + $0x8] sm:$0xff]
        %v275 = vld [vmem:[%s267 + $0x10] sm:$0xff]
        %v276 = vld [vmem:[%s267 + $0x18] sm:$0xff]
        %v277 = vld [vmem:[%s267 + $0x20] sm:$0xff]
        %v278 = vld [vmem:[%s267 + $0x28] sm:$0xff]
        %v279 = vld [vmem:[%s217] sm:$0xff]
        %v280 = vld [vmem:[%s217 + $0x8] sm:$0xff]
        %v281 = vld [vmem:[%s217 + $0x10] sm:$0xff]
        %v282 = vld [vmem:[%s217 + $0x18] sm:$0xff]
        %v283 = vld [vmem:[%s217 + $0x20] sm:$0xff]
        %v284 = vld [vmem:[%s217 + $0x28] sm:$0xff]
        %v285 = vld [vmem:[%s217 + $0x30] sm:$0xff]
        %v286 = vld [vmem:[%s217 + $0x38] sm:$0xff]
        %v287 = vld [vmem:[%s217 + $0x40] sm:$0xff]
        %v288 = vld [vmem:[%s217 + $0x48] sm:$0xff]
        %v289 = vld [vmem:[%s217 + $0x50] sm:$0xff]
        %v290 = vld [vmem:[%s217 + $0x58] sm:$0xff]
        %v291 = vld [vmem:[%s217 + $0x60] sm:$0xff]
        %v292 = vld [vmem:[%s217 + $0x68] sm:$0xff]
        %v293 = vld [vmem:[%s217 + $0x70] sm:$0xff]
        %v294 = vld [vmem:[%s217 + $0x78] sm:$0xff]
        %v295 = vld [vmem:[%s217 + $0x80] sm:$0xff]
        %v296 = vld [vmem:[%s217 + $0x88] sm:$0xff]
        %v297 = vld [vmem:[%s217 + $0x90] sm:$0xff]
        %v298 = vld [vmem:[%s217 + $0x98] sm:$0xff]
        %v299 = vld [vmem:[%s217 + $0xa0] sm:$0xff]
        %v300 = vld [vmem:[%s217 + $0xa8] sm:$0xff]
        %v301 = vld [vmem:[%s217 + $0xb0] sm:$0xff]
        %v302 = vld [vmem:[%s217 + $0xb8] sm:$0xff]
        %v303 = vld [vmem:[%s217 + $0xc0] sm:$0xff]
        %v304 = vld [vmem:[%s217 + $0xc8] sm:$0xff]
        %v305 = vld [vmem:[%s217 + $0xd0] sm:$0xff]
        %v306 = vld [vmem:[%s217 + $0xd8] sm:$0xff]
        %v307 = vld [vmem:[%s217 + $0xe0] sm:$0xff]
        %v308 = vld [vmem:[%s217 + $0xe8] sm:$0xff]
        %v309 = vld [vmem:[%s217 + $0xf0] sm:$0xff]
        %v310 = vld [vmem:[%s217 + $0xf8] sm:$0xff]
        %v311 = vld [vmem:[%s217 + $0x100] sm:$0xff]
        %v312 = vld [vmem:[%s217 + $0x108] sm:$0xff]
        %v313 = vld [vmem:[%s217 + $0x110] sm:$0xff]
        %v314 = vld [vmem:[%s217 + $0x118] sm:$0xff]
        %v315 = vld [vmem:[%s217 + $0x120] sm:$0xff]
        %v316 = vld [vmem:[%s217 + $0x128] sm:$0xff]
        %v317 = vld [vmem:[%s217 + $0x130] sm:$0xff]
        %v318 = vld [vmem:[%s217 + $0x138] sm:$0xff]
        %v319 = vld [vmem:[%s217 + $0x140] sm:$0xff]
        %v320 = vld [vmem:[%s217 + $0x148] sm:$0xff]
        %v321 = vld [vmem:[%s217 + $0x150] sm:$0xff]
        %v322 = vld [vmem:[%s217 + $0x158] sm:$0xff]
        %v323 = vld [vmem:[%s217 + $0x160] sm:$0xff]
        %v324 = vld [vmem:[%s217 + $0x168] sm:$0xff]
        %v325 = vld [vmem:[%s217 + $0x170] sm:$0xff]
        %v326 = vld [vmem:[%s217 + $0x178] sm:$0xff]
        %v327 = vld [vmem:[%s217 + $0x180] sm:$0xff]
        %v328 = vld [vmem:[%s217 + $0x188] sm:$0xff]
        %v329 = vld [vmem:[%s217 + $0x190] sm:$0xff]
        %v330 = vld [vmem:[%s217 + $0x198] sm:$0xff]
        %v331 = vld [vmem:[%s217 + $0x1a0] sm:$0xff]
        %v332 = vld [vmem:[%s217 + $0x1a8] sm:$0xff]
        %v333 = vld [vmem:[%s217 + $0x1b0] sm:$0xff]
        %v334 = vld [vmem:[%s217 + $0x1b8] sm:$0xff]
        %v335 = vld [vmem:[%s217 + $0x1c0] sm:$0xff]
        %v336 = vld [vmem:[%s217 + $0x1c8] sm:$0xff]
        %v337 = vld [vmem:[%s217 + $0x1d0] sm:$0xff]
        %v338 = vld [vmem:[%s217 + $0x1d8] sm:$0xff]
        %v339 = vld [vmem:[%s217 + $0x1e0] sm:$0xff]
        %v340 = vld [vmem:[%s217 + $0x1e8] sm:$0xff]
        %v341 = vld [vmem:[%s217 + $0x1f0] sm:$0xff]
        %v342 = vld [vmem:[%s217 + $0x1f8] sm:$0xff]
        %v343 = vld [vmem:[%s217 + $0x200] sm:$0xff]
        %v344 = vld [vmem:[%s217 + $0x208] sm:$0xff]
        %v345 = vld [vmem:[%s217 + $0x210] sm:$0xff]
        %v346 = vld [vmem:[%s217 + $0x218] sm:$0xff]
        %v347 = vld [vmem:[%s217 + $0x220] sm:$0xff]
        %v348 = vld [vmem:[%s217 + $0x228] sm:$0xff]
        %v349 = vld [vmem:[%s217 + $0x230] sm:$0xff]
        %v350 = vld [vmem:[%s217 + $0x238] sm:$0xff]
        %v351 = vld [vmem:[%s217 + $0x240] sm:$0xff]
        %v352 = vld [vmem:[%s217 + $0x248] sm:$0xff]
        %v353 = vld [vmem:[%s217 + $0x250] sm:$0xff]
        %v354 = vld [vmem:[%s217 + $0x258] sm:$0xff]
        %v355 = vld [vmem:[%s217 + $0x260] sm:$0xff]
        %v356 = vld [vmem:[%s217 + $0x268] sm:$0xff]
        %v357 = vld [vmem:[%s217 + $0x270] sm:$0xff]
        %v358 = vld [vmem:[%s217 + $0x278] sm:$0xff]
        %v359 = vld [vmem:[%s217 + $0x280] sm:$0xff]
        %v360 = vld [vmem:[%s217 + $0x288] sm:$0xff]
        %v361 = vld [vmem:[%s217 + $0x290] sm:$0xff]
        %v362 = vld [vmem:[%s217 + $0x298] sm:$0xff]
        %v363 = vld [vmem:[%s217 + $0x2a0] sm:$0xff]
        %v364 = vld [vmem:[%s217 + $0x2a8] sm:$0xff]
        %v365 = vld [vmem:[%s217 + $0x2b0] sm:$0xff]
        %v366 = vld [vmem:[%s217 + $0x2b8] sm:$0xff]
        %v367 = vld [vmem:[%s217 + $0x2c0] sm:$0xff]
        %v368 = vld [vmem:[%s217 + $0x2c8] sm:$0xff]
        %v369 = vld [vmem:[%s217 + $0x2d0] sm:$0xff]
        %v370 = vld [vmem:[%s217 + $0x2d8] sm:$0xff]
        %v371 = vld [vmem:[%s217 + $0x2e0] sm:$0xff]
        %v372 = vld [vmem:[%s217 + $0x2e8] sm:$0xff]
        %v373 = vld [vmem:[%s217 + $0x2f0] sm:$0xff]
        %v374 = vld [vmem:[%s217 + $0x2f8] sm:$0xff]
        %v375 = vld [vmem:[%s217 + $0x300] sm:$0xff]
        %v376 = vld [vmem:[%s217 + $0x308] sm:$0xff]
        %v377 = vld [vmem:[%s217 + $0x310] sm:$0xff]
        %v378 = vld [vmem:[%s217 + $0x318] sm:$0xff]
        %v379 = vld [vmem:[%s217 + $0x320] sm:$0xff]
        %v380 = vld [vmem:[%s217 + $0x328] sm:$0xff]
        %v381 = vld [vmem:[%s217 + $0x330] sm:$0xff]
        %v382 = vld [vmem:[%s217 + $0x338] sm:$0xff]
        %v383 = vld [vmem:[%s217 + $0x340] sm:$0xff]
        %v384 = vld [vmem:[%s217 + $0x348] sm:$0xff]
        %v385 = vld [vmem:[%s217 + $0x350] sm:$0xff]
        %v386 = vld [vmem:[%s217 + $0x358] sm:$0xff]
        %v387 = vld [vmem:[%s217 + $0x360] sm:$0xff]
        %v388 = vld [vmem:[%s217 + $0x368] sm:$0xff]
        %v389 = vld [vmem:[%s217 + $0x370] sm:$0xff]
        %v390 = vld [vmem:[%s217 + $0x378] sm:$0xff]
        %v391 = vld [vmem:[%s217 + $0x380] sm:$0xff]
        %v392 = vld [vmem:[%s217 + $0x388] sm:$0xff]
        %v393 = vld [vmem:[%s217 + $0x390] sm:$0xff]
        %v394 = vld [vmem:[%s217 + $0x398] sm:$0xff]
        %v395 = vld [vmem:[%s217 + $0x3a0] sm:$0xff]
        %v396 = vld [vmem:[%s217 + $0x3a8] sm:$0xff]
        %v397 = vld [vmem:[%s217 + $0x3b0] sm:$0xff]
        %v398 = vld [vmem:[%s217 + $0x3b8] sm:$0xff]
        %v399 = vld [vmem:[%s217 + $0x3c0] sm:$0xff]
        %v400 = vld [vmem:[%s217 + $0x3c8] sm:$0xff]
        %v401 = vld [vmem:[%s217 + $0x3d0] sm:$0xff]
        %v402 = vld [vmem:[%s217 + $0x3d8] sm:$0xff]
        %v403 = vld [vmem:[%s217 + $0x3e0] sm:$0xff]
        %v404 = vld [vmem:[%s217 + $0x3e8] sm:$0xff]
        %v405 = vld [vmem:[%s217 + $0x3f0] sm:$0xff]
        %v406 = vld [vmem:[%s217 + $0x3f8] sm:$0xff]
        %v407 = vld [vmem:[%s217 + $0x400] sm:$0xff]
        %v408 = vld [vmem:[%s217 + $0x408] sm:$0xff]
        %v409 = vld [vmem:[%s217 + $0x410] sm:$0xff]
        %v410 = vld [vmem:[%s217 + $0x418] sm:$0xff]
        %v411 = vld [vmem:[%s217 + $0x420] sm:$0xff]
        %v412 = vld [vmem:[%s217 + $0x428] sm:$0xff]
        %v413 = vld [vmem:[%s217 + $0x430] sm:$0xff]
        %v414 = vld [vmem:[%s217 + $0x438] sm:$0xff]
        %v415 = vld [vmem:[%s217 + $0x440] sm:$0xff]
        %v416 = vld [vmem:[%s217 + $0x448] sm:$0xff]
        %v417 = vld [vmem:[%s217 + $0x450] sm:$0xff]
        %v418 = vld [vmem:[%s217 + $0x458] sm:$0xff]
        %v419 = vld [vmem:[%s217 + $0x460] sm:$0xff]
        %v420 = vld [vmem:[%s217 + $0x468] sm:$0xff]
        %v421 = vld [vmem:[%s217 + $0x470] sm:$0xff]
        %v422 = vld [vmem:[%s217 + $0x478] sm:$0xff]
        %v423 = vld [vmem:[%s227] sm:$0x7]
        %v425 = vperm.slane %v423, 0
        %v426 = vperm.slane %v423, 1
        %v427 = vperm.slane %v423, 2
        %431 = vmatpush.msra.mxu0 %v324
        %432 = vmatpush.msra.mxu0 %v321
        %433 = vmatpush.msra.mxu0 %v318
        %434 = vmatpush.msra.mxu0 %v315
        %435 = vmatpush.msra.mxu0 %v312
        %436 = vmatpush.msra.mxu0 %v309
        %437 = vmatpush.msra.mxu0 %v306
        %438 = vmatpush.msra.mxu0 %v303
        %439 = vmatpush.msra.mxu0 %v300
        %440 = vmatpush.msra.mxu0 %v297
        %441 = vmatpush.msra.mxu0 %v294
        %442 = vmatpush.msra.mxu0 %v291
        %443 = vmatpush.msra.mxu0 %v288
        %444 = vmatpush.msra.mxu0 %v285
        %445 = vmatpush.msra.mxu0 %v282
        %446 = vmatpush.msra.mxu0 %v279
        %447 = vmatmul.f32.gmra.mxu0 %v273
        %v448 = vpop.f32.mrf.mxu0
        %v449 = vadd.f32 %v425, %v448
        %450 = vmatmul.f32.gmra.mxu0 %v276
        %v451 = vpop.f32.mrf.mxu0
        %v452 = vadd.f32 %v425, %v451
        %453 = vdwg.mxu0
        %454 = vmatpush.msra.mxu0 %v372
        %455 = vmatpush.msra.mxu0 %v369
        %456 = vmatpush.msra.mxu0 %v366
        %457 = vmatpush.msra.mxu0 %v363
        %458 = vmatpush.msra.mxu0 %v360
        %459 = vmatpush.msra.mxu0 %v357
        %460 = vmatpush.msra.mxu0 %v354
        %461 = vmatpush.msra.mxu0 %v351
        %462 = vmatpush.msra.mxu0 %v348
        %463 = vmatpush.msra.mxu0 %v345
        %464 = vmatpush.msra.mxu0 %v342
        %465 = vmatpush.msra.mxu0 %v339
        %466 = vmatpush.msra.mxu0 %v336
        %467 = vmatpush.msra.mxu0 %v333
        %468 = vmatpush.msra.mxu0 %v330
        %469 = vmatpush.msra.mxu0 %v327
        %470 = vmatmul.f32.gmra.mxu0 %v274
        %v471 = vpop.f32.mrf.mxu0
        %v472 = vadd.f32 %v449, %v471
        %473 = vmatmul.f32.gmra.mxu0 %v277
        %v474 = vpop.f32.mrf.mxu0
        %v475 = vadd.f32 %v452, %v474
        %476 = vdwg.mxu0
        %477 = vmatpush.msra.mxu0 %v420
        %478 = vmatpush.msra.mxu0 %v417
        %479 = vmatpush.msra.mxu0 %v414
        %480 = vmatpush.msra.mxu0 %v411
        %481 = vmatpush.msra.mxu0 %v408
        %482 = vmatpush.msra.mxu0 %v405
        %483 = vmatpush.msra.mxu0 %v402
        %484 = vmatpush.msra.mxu0 %v399
        %485 = vmatpush.msra.mxu0 %v396
        %486 = vmatpush.msra.mxu0 %v393
        %487 = vmatpush.msra.mxu0 %v390
        %488 = vmatpush.msra.mxu0 %v387
        %489 = vmatpush.msra.mxu0 %v384
        %490 = vmatpush.msra.mxu0 %v381
        %491 = vmatpush.msra.mxu0 %v378
        %492 = vmatpush.msra.mxu0 %v375
        %493 = vmatmul.f32.gmra.mxu0 %v275
        %v494 = vpop.f32.mrf.mxu0
        %v495 = vadd.f32 %v472, %v494
        %496 = vmatmul.f32.gmra.mxu0 %v278
        %v497 = vpop.f32.mrf.mxu0
        %v498 = vadd.f32 %v475, %v497
        %499 = vdwg.mxu0
        %500 = vmatpush.msra.mxu0 %v325
        %501 = vmatpush.msra.mxu0 %v322
        %502 = vmatpush.msra.mxu0 %v319
        %503 = vmatpush.msra.mxu0 %v316
        %504 = vmatpush.msra.mxu0 %v313
        %505 = vmatpush.msra.mxu0 %v310
        %506 = vmatpush.msra.mxu0 %v307
        %507 = vmatpush.msra.mxu0 %v304
        %508 = vmatpush.msra.mxu0 %v301
        %509 = vmatpush.msra.mxu0 %v298
        %510 = vmatpush.msra.mxu0 %v295
        %511 = vmatpush.msra.mxu0 %v292
        %512 = vmatpush.msra.mxu0 %v289
        %513 = vmatpush.msra.mxu0 %v286
        %514 = vmatpush.msra.mxu0 %v283
        %515 = vmatpush.msra.mxu0 %v280
        %516 = vmatmul.f32.gmra.mxu0 %v273
        %v517 = vpop.f32.mrf.mxu0
        %v518 = vadd.f32 %v426, %v517
        %519 = vmatmul.f32.gmra.mxu0 %v276
        %v520 = vpop.f32.mrf.mxu0
        %v521 = vadd.f32 %v426, %v520
        %522 = vdwg.mxu0
        %523 = vmatpush.msra.mxu0 %v373
        %524 = vmatpush.msra.mxu0 %v370
        %525 = vmatpush.msra.mxu0 %v367
        %526 = vmatpush.msra.mxu0 %v364
        %527 = vmatpush.msra.mxu0 %v361
        %528 = vmatpush.msra.mxu0 %v358
        %529 = vmatpush.msra.mxu0 %v355
        %530 = vmatpush.msra.mxu0 %v352
        %531 = vmatpush.msra.mxu0 %v349
        %532 = vmatpush.msra.mxu0 %v346
        %533 = vmatpush.msra.mxu0 %v343
        %534 = vmatpush.msra.mxu0 %v340
        %535 = vmatpush.msra.mxu0 %v337
        %536 = vmatpush.msra.mxu0 %v334
        %537 = vmatpush.msra.mxu0 %v331
        %538 = vmatpush.msra.mxu0 %v328
        %539 = vmatmul.f32.gmra.mxu0 %v274
        %v540 = vpop.f32.mrf.mxu0
        %v541 = vadd.f32 %v518, %v540
        %542 = vmatmul.f32.gmra.mxu0 %v277
        %v543 = vpop.f32.mrf.mxu0
        %v544 = vadd.f32 %v521, %v543
        %545 = vdwg.mxu0
        %546 = vmatpush.msra.mxu0 %v421
        %547 = vmatpush.msra.mxu0 %v418
        %548 = vmatpush.msra.mxu0 %v415
        %549 = vmatpush.msra.mxu0 %v412
        %550 = vmatpush.msra.mxu0 %v409
        %551 = vmatpush.msra.mxu0 %v406
        %552 = vmatpush.msra.mxu0 %v403
        %553 = vmatpush.msra.mxu0 %v400
        %554 = vmatpush.msra.mxu0 %v397
        %555 = vmatpush.msra.mxu0 %v394
        %556 = vmatpush.msra.mxu0 %v391
        %557 = vmatpush.msra.mxu0 %v388
        %558 = vmatpush.msra.mxu0 %v385
        %559 = vmatpush.msra.mxu0 %v382
        %560 = vmatpush.msra.mxu0 %v379
        %561 = vmatpush.msra.mxu0 %v376
        %562 = vmatmul.f32.gmra.mxu0 %v275
        %v563 = vpop.f32.mrf.mxu0
        %v564 = vadd.f32 %v541, %v563
        %565 = vmatmul.f32.gmra.mxu0 %v278
        %v566 = vpop.f32.mrf.mxu0
        %v567 = vadd.f32 %v544, %v566
        %568 = vdwg.mxu0
        %569 = vmatpush.msra.mxu0 %v326
        %570 = vmatpush.msra.mxu0 %v323
        %571 = vmatpush.msra.mxu0 %v320
        %572 = vmatpush.msra.mxu0 %v317
        %573 = vmatpush.msra.mxu0 %v314
        %574 = vmatpush.msra.mxu0 %v311
        %575 = vmatpush.msra.mxu0 %v308
        %576 = vmatpush.msra.mxu0 %v305
        %577 = vmatpush.msra.mxu0 %v302
        %578 = vmatpush.msra.mxu0 %v299
        %579 = vmatpush.msra.mxu0 %v296
        %580 = vmatpush.msra.mxu0 %v293
        %581 = vmatpush.msra.mxu0 %v290
        %582 = vmatpush.msra.mxu0 %v287
        %583 = vmatpush.msra.mxu0 %v284
        %584 = vmatpush.msra.mxu0 %v281
        %585 = vmatmul.f32.gmra.mxu0 %v273
        %v586 = vpop.f32.mrf.mxu0
        %v587 = vadd.f32 %v427, %v586
        %588 = vmatmul.f32.gmra.mxu0 %v276
        %v589 = vpop.f32.mrf.mxu0
        %v590 = vadd.f32 %v427, %v589
        %591 = vdwg.mxu0
        %592 = vmatpush.msra.mxu0 %v374
        %593 = vmatpush.msra.mxu0 %v371
        %594 = vmatpush.msra.mxu0 %v368
        %595 = vmatpush.msra.mxu0 %v365
        %596 = vmatpush.msra.mxu0 %v362
        %597 = vmatpush.msra.mxu0 %v359
        %598 = vmatpush.msra.mxu0 %v356
        %599 = vmatpush.msra.mxu0 %v353
        %600 = vmatpush.msra.mxu0 %v350
        %601 = vmatpush.msra.mxu0 %v347
        %602 = vmatpush.msra.mxu0 %v344
        %603 = vmatpush.msra.mxu0 %v341
        %604 = vmatpush.msra.mxu0 %v338
        %605 = vmatpush.msra.mxu0 %v335
        %606 = vmatpush.msra.mxu0 %v332
        %607 = vmatpush.msra.mxu0 %v329
        %608 = vmatmul.f32.gmra.mxu0 %v274
        %v609 = vpop.f32.mrf.mxu0
        %v610 = vadd.f32 %v587, %v609
        %611 = vmatmul.f32.gmra.mxu0 %v277
        %v612 = vpop.f32.mrf.mxu0
        %v613 = vadd.f32 %v590, %v612
        %614 = vdwg.mxu0
        %615 = vmatpush.msra.mxu0 %v422
        %616 = vmatpush.msra.mxu0 %v419
        %617 = vmatpush.msra.mxu0 %v416
        %618 = vmatpush.msra.mxu0 %v413
        %619 = vmatpush.msra.mxu0 %v410
        %620 = vmatpush.msra.mxu0 %v407
        %621 = vmatpush.msra.mxu0 %v404
        %622 = vmatpush.msra.mxu0 %v401
        %623 = vmatpush.msra.mxu0 %v398
        %624 = vmatpush.msra.mxu0 %v395
        %625 = vmatpush.msra.mxu0 %v392
        %626 = vmatpush.msra.mxu0 %v389
        %627 = vmatpush.msra.mxu0 %v386
        %628 = vmatpush.msra.mxu0 %v383
        %629 = vmatpush.msra.mxu0 %v380
        %630 = vmatpush.msra.mxu0 %v377
        %631 = vmatmul.f32.gmra.mxu0 %v275
        %v632 = vpop.f32.mrf.mxu0
        %v633 = vadd.f32 %v610, %v632
        %634 = vmatmul.f32.gmra.mxu0 %v278
        %v635 = vpop.f32.mrf.mxu0
        %v636 = vadd.f32 %v613, %v635
        %637 = vdwg.mxu0
        %638 = vst [vmem:[%s261] sm:$0xff] %v495
        %639 = vst [vmem:[%s261 + $0x8] sm:$0xff] %v564
        %640 = vst [vmem:[%s261 + $0x10] sm:$0xff] %v633
        %641 = vst [vmem:[%s261 + $0x18] sm:$0xff] %v498
        %642 = vst [vmem:[%s261 + $0x20] sm:$0xff] %v567
        %643 = vst [vmem:[%s261 + $0x28] sm:$0xff] %v636
        %s644 = sand.u32 %s123, 1
        %s645 = scalar_lea.sflag [#allocation4], %s644
        %s646 = sand.u32 %s123, 1
        %s647 = smul.addr %s646, 48
        %s648 = scalar_lea.vmem [#allocation7], %s647
        // Predicated region
        $region41: #{_linear_call.1} parent=31 // pred_check
          %p649 = pneg %p133
        $region42: #{_linear_call.1} parent=31 // pred_check_branch
          %651 = sbr.rel (%p649) target = $region44
        $region43: #{_linear_call.1} parent=31 // pred_region
          %s652 = smul.u32 2, %s27
          %s653 = smul.u32 3, %s28
          %655 = vsyncadd %s645, 0
          %s656 = smul.addr %s652, 6
          %s657 = sadd.s32 %s653, %s656
          %s658 = smul.addr %s657, 8
          %s659 = scalar_lea.hbm %s3, %s658
          %s660 = sshll.u32 %s648, 4
          %s661 = int_to_ptr.vmem [resolvable:$true] %s660
          %s662 = sshll.u32 %s659, 4
          %s663 = int_to_ptr.hbm [resolvable:$true] %s662
          %668 = dma.vmem_to_hbm [thread:$0]  %s661, 768, %s663, %s645, 384, 768, 24
        $region44: #{_linear_call.1} parent=31 // pred_fallthru
          _
      $region32: #{_linear_call.1} parent=5 // pred_fallthru
        _
      %p669 = scmp.le.s32.totalorder 2, %s18
      // Predicated region
      $region45: #{_linear_call.1} parent=5 // pred_check
        %p670 = pneg %p669
      $region46: #{_linear_call.1} parent=5 // pred_check_branch
        %672 = sbr.rel (%p670) target = $region48
      $region47: #{_linear_call.1} parent=5 // pred_region
        %s673 = ssub.s32 %s18, 2
        // Predicated region
        $region49: #{_linear_call.1} parent=47 // pred_check
          %p674 = pneg %p139
        $region50: #{_linear_call.1} parent=47 // pred_check_branch
          %676 = sbr.rel (%p674) target = $region52
        $region51: #{_linear_call.1} parent=47 // pred_region
          %s677 = sand.u32 %s124, 1
          %s678 = scalar_lea.sflag [#allocation4], %s677
          %s679 = sand.u32 %s124, 1
          %s680 = smul.addr %s679, 48
          %s681 = scalar_lea.vmem [#allocation7], %s680
          %683 = dma.done %s678, 768
        $region52: #{_linear_call.1} parent=47 // pred_fallthru
          _
      $region48: #{_linear_call.1} parent=5 // pred_fallthru
        _
    $region6: #{_linear_call.1} parent=1 // loop_footer
      %s22 = sadd.s32 1, %s18
    $region7: #{_linear_call.1} parent=1 // loop_footer_branch
      %17 = sbr.rel target = $region3
    $region8: #{_linear_call.1} parent=1 // loop_exit
      _
    %684 = vsyncpa [#allocation3], 1
    %s685 = scalar_lea.sflag [#allocation3], 1
    %686 = vsyncpa %s685, 1
    %687 = vsyncpa [#allocation6], 1
    %s688 = scalar_lea.sflag [#allocation6], 1
    %689 = vsyncpa %s688, 1
    %690 = vsyncpa [#allocation4], 1
    %s691 = scalar_lea.sflag [#allocation4], 1
    %692 = vsyncpa %s691, 1

</llo_original>
